<compile_context>
chip_gen: v5e
topology: v5e:2x2
jax: 0.10.0
libtpu: 0.0.40
codegen_flags: <defaults>
</compile_context>

<pallas_src>
import functools

import jax
import jax.numpy as jnp
from jax.experimental import pallas as pl
from jax.experimental.pallas import tpu as pltpu

LANES = 128
SUBLANES = 8
MAX_TM = 4096                       # rows/step: 4096*128*4 B = 2 MiB per input per buffer
VMEM_LIMIT_BYTES = 32 * 1024 * 1024  # explicit scoped-VMEM limit (safe on v5e/v6e/v7x)
ACC_ROW_CHOICES = (64, 32, 16, 8)    # widest accumulator whose row count divides tm


def _huber_elementwise(p, t, rho):
    x = jnp.abs(t.astype(jnp.float32) - p.astype(jnp.float32))
    return jnp.where(x > rho, x - 0.5 * rho, (0.5 / rho) * (x * x))


def _num_tensorcores():
    """2 only on v7x-style chips (2 TensorCores); v5e/v6e have 1."""
    try:
        kind = (getattr(jax.devices()[0], "device_kind", "") or "").lower()
        if "v7" in kind:
            return 2
    except Exception:
        pass
    return 1


def _huber_partial_kernel(p_ref, t_ref, out_ref, acc_ref, *,
                          rho, rows, tm, bpc, acc_rows, mask_from, any_masked):
    c = pl.program_id(0)            # core / outer axis
    i = pl.program_id(1)            # block index within this core's row range
    blk = c * bpc + i

    @pl.when(i == 0)
    def _():
        acc_ref[...] = jnp.zeros_like(acc_ref)

    # Cast in-kernel (bf16 inputs halve HBM bytes; accumulation stays f32).
    # TODO(synk): optional bf16 elementwise fast path on bf16-VPU chips
    # (v6e/v7x) with f32 partial sums, pending numeric validation.
    p = p_ref[...].astype(jnp.float32)
    t = t_ref[...].astype(jnp.float32)
    x = jnp.abs(t - p)
    loss = jnp.where(x > rho, x - 0.5 * rho, (0.5 / rho) * (x * x))

    def _fold(vals):
        # (tm,128) -> (acc_rows,128): short, independent vreg-aligned add chains
        # on the VPU; no cross-lane reduce per step.
        acc_ref[...] += jnp.sum(
            vals.reshape(tm // acc_rows, acc_rows, LANES), axis=0)

    if any_masked:
        # Only the ragged last block / overrun blocks pay the iota+compare+select.
        @pl.when(blk >= mask_from)
        def _():
            r = jax.lax.broadcasted_iota(jnp.int32, (tm, LANES), 0)
            global_row = blk * tm + r
            _fold(jnp.where(global_row < rows, loss, jnp.float32(0.0)))

        @pl.when(blk < mask_from)
        def _():
            _fold(loss)
    else:
        _fold(loss)

    @pl.when(i == bpc - 1)
    def _():
        out_ref[0, 0] = jnp.sum(acc_ref[...])


def huber_mse_loss(predict, truth, rho=1.0, *, max_tm=MAX_TM):
    """Pallas TPU implementation of HuberMSELoss.forward -> scalar mean loss."""
    assert predict.shape == truth.shape, "predict/truth must have the same shape"
    n = predict.size
    assert n > 0
    rho = float(rho)

    p_flat = predict.reshape(-1)
    t_flat = truth.reshape(-1)

    # dtype sublane packing: 8 rows for f32, 16 for bf16, 32 for int8/fp8.
    itemsize = max(1, predict.dtype.itemsize)
    row_mult = SUBLANES * max(1, 4 // itemsize)

    n_main = (n // LANES) * LANES        # 128-lane aligned prefix
    rows = n_main // LANES

    if rows < row_mult:
        # Too small for a (row_mult,128) tile -> tiny jnp expression, no kernel.
        return jnp.mean(_huber_elementwise(p_flat, t_flat, rho))

    # Non-128-aligned tail (< 128 elements): fold in with a tiny jnp expression
    # instead of materializing padded copies of both inputs.
    tail_sum = None
    if n_main != n:
        tail_sum = jnp.sum(_huber_elementwise(p_flat[n_main:], t_flat[n_main:], rho))
        p_main, t_main = p_flat[:n_main], t_flat[:n_main]
    else:
        p_main, t_main = p_flat, t_flat      # zero-copy reshape below

    p2 = p_main.reshape(rows, LANES)
    t2 = t_main.reshape(rows, LANES)

    # Tile rows: <= max_tm, <= rows, multiple of the dtype packing multiple.
    tm = min(int(max_tm), rows)
    tm = max(row_mult, (tm // row_mult) * row_mult)
    acc_rows = next(r for r in ACC_ROW_CHOICES if tm % r == 0)

    num_blocks = pl.cdiv(rows, tm)
    ncores = 2 if (_num_tensorcores() == 2 and num_blocks >= 2) else 1
    bpc = pl.cdiv(num_blocks, ncores)          # blocks per core
    total_steps = ncores * bpc
    ragged = (num_blocks * tm) != rows
    has_overrun = total_steps != num_blocks
    any_masked = ragged or has_overrun
    mask_from = (num_blocks - 1) if ragged else num_blocks
    last_block = num_blocks - 1

    if has_overrun:
        # Overrun iterations (odd block count split over 2 cores) re-read the
        # last real block; their contribution is zeroed by the gated row mask.
        def in_map(c, i):
            return (jnp.minimum(c * bpc + i, last_block), 0)
    else:
        def in_map(c, i):
            return (c * bpc + i, 0)

    if ncores == 2:
        # TODO(synk): verify in an xprof trace that "parallel" actually shards
        # across the two v7x TensorCores; switch to pltpu.CORE_PARALLEL if not.
        dim_sems = ("parallel", "arbitrary")
    else:
        dim_sems = ("arbitrary", "arbitrary")

    kernel = functools.partial(
        _huber_partial_kernel, rho=rho, rows=rows, tm=tm, bpc=bpc,
        acc_rows=acc_rows, mask_from=mask_from, any_masked=any_masked)

    partials = pl.pallas_call(
        kernel,
        out_shape=jax.ShapeDtypeStruct((ncores, 1), jnp.float32),
        grid_spec=pltpu.PrefetchScalarGridSpec(
            num_scalar_prefetch=0,
            grid=(ncores, bpc),
            in_specs=[
                pl.BlockSpec((tm, LANES), in_map),
                pl.BlockSpec((tm, LANES), in_map),
            ],
            out_specs=pl.BlockSpec((1, 1), lambda c, i: (c, 0),
                                   memory_space=pltpu.SMEM),
            scratch_shapes=[pltpu.VMEM((acc_rows, LANES), jnp.float32)],
        ),
        compiler_params=pltpu.CompilerParams(
            dimension_semantics=dim_sems,
            vmem_limit_bytes=VMEM_LIMIT_BYTES,
        ),
    )(p2, t2)

    total = jnp.sum(partials)
    if tail_sum is not None:
        total = total + tail_sum
    return total / jnp.float32(n)


def _reference_huber(predict, truth, rho=1.0):
    x = jnp.abs(truth.astype(jnp.float32) - predict.astype(jnp.float32))
    loss = jnp.where(x > rho, x - 0.5 * rho, (0.5 / rho) * x * x)
    return jnp.mean(loss)


if __name__ == "__main__":
    key = jax.random.PRNGKey(0)
    k1, k2 = jax.random.split(key)

    # 1) Primary NCHW-like shape, 128-aligned, single block, no mask.
    shape = (2, 4, 16, 16)
    predict = jax.random.normal(k1, shape, dtype=jnp.float32)
    truth = jax.random.normal(k2, shape, dtype=jnp.float32) * 2.0
    out = jax.block_until_ready(huber_mse_loss(predict, truth, rho=1.0))
    ref = _reference_huber(predict, truth, rho=1.0)
    assert jnp.allclose(out, ref, rtol=1e-5, atol=1e-6), (out, ref)

    # 2) Tiny, non-128-aligned element count -> pure-jnp fallback path.
    p2 = jax.random.normal(k1, (5, 7, 9), dtype=jnp.float32)
    t2 = jax.random.normal(k2, (5, 7, 9), dtype=jnp.float32)
    out2 = jax.block_until_ready(huber_mse_loss(p2, t2, rho=0.5))
    ref2 = _reference_huber(p2, t2, rho=0.5)
    assert jnp.allclose(out2, ref2, rtol=1e-5, atol=1e-6), (out2, ref2)

    # 3) Non-128-aligned: kernel on the 128-aligned prefix (ragged last block,
    #    gated mask) + <128-element jnp tail. No padded copies.
    p3 = jax.random.normal(k1, (9, 700), dtype=jnp.float32)
    t3 = jax.random.normal(k2, (9, 700), dtype=jnp.float32)
    out3 = jax.block_until_ready(huber_mse_loss(p3, t3, rho=1.0))
    ref3 = _reference_huber(p3, t3, rho=1.0)
    assert jnp.allclose(out3, ref3, rtol=1e-5, atol=1e-6), (out3, ref3)

    # 4) bf16 inputs with a small max_tm: multi-block, ragged boundary, gated
    #    mask, bf16 packing multiple (tm=48, acc_rows=16); f32 math in-kernel.
    p4 = jax.random.normal(k1, (4, 8, 32, 32), dtype=jnp.bfloat16)
    t4 = jax.random.normal(k2, (4, 8, 32, 32), dtype=jnp.bfloat16)
    out4 = jax.block_until_ready(huber_mse_loss(p4, t4, rho=1.0, max_tm=48))
    ref4 = _reference_huber(p4, t4, rho=1.0)
    assert jnp.allclose(out4, ref4, rtol=1e-4, atol=1e-5), (out4, ref4)

    # 5) Larger aligned f32 case: multi-block streaming at tm=4096, acc_rows=64.
    p5 = jax.random.normal(k1, (4, 4, 256, 256), dtype=jnp.float32)
    t5 = jax.random.normal(k2, (4, 4, 256, 256), dtype=jnp.float32)
    out5 = jax.block_until_ready(huber_mse_loss(p5, t5, rho=2.0))
    ref5 = _reference_huber(p5, t5, rho=2.0)
    assert jnp.allclose(out5, ref5, rtol=2e-5, atol=1e-6), (out5, ref5)

    print("KERNEL_OK")
</pallas_src>

<mosaic_0001>
module attributes {stable_mosaic.version = 11 : i64} {
  func.func @_huber_partial_kernel(%arg0: i32, %arg1: i32, %arg2: memref<16x128xf32, #tpu.memory_space<vmem>>, %arg3: memref<16x128xf32, #tpu.memory_space<vmem>>, %arg4: memref<1x1xf32, #tpu.memory_space<smem>>, %arg5: memref<16x128xf32, #tpu.memory_space<vmem>>) attributes {dimension_semantics = [#tpu.dimension_semantics<arbitrary>, #tpu.dimension_semantics<arbitrary>], iteration_bounds = array<i64: 1, 1>, scalar_prefetch = 0 : i64, scratch_operands = 1 : i64, tpu.core_type = #tpu.core_type<tc>, window_params = [{transform_indices = @transform_0, window_bounds = array<i64: 16, 128>}, {transform_indices = @transform_1, window_bounds = array<i64: 16, 128>}, {transform_indices = @transform_2, window_bounds = array<i64: 1, 1>}]} {
    %c0_i32 = arith.constant 0 : i32
    %0 = arith.cmpi eq, %arg1, %c0_i32 : i32
    %1 = arith.extui %0 : i1 to i32
    %c0_i32_0 = arith.constant 0 : i32
    %2 = arith.cmpi ne, %1, %c0_i32_0 : i32
    scf.if %2 {
      %cst_13 = arith.constant 0.000000e+00 : f32
      %23 = vector.broadcast %cst_13 : f32 to vector<16x128xf32>
      %c0_14 = arith.constant 0 : index
      %c0_15 = arith.constant 0 : index
      %24 = vector.load %arg5[%c0_14, %c0_15] : memref<16x128xf32, #tpu.memory_space<vmem>>, vector<16x128xf32>
      tpu.vector_store %arg5[%c0_14, %c0_15], %23 {strides = array<i32>} : memref<16x128xf32, #tpu.memory_space<vmem>>, vector<16x128xf32>,
    } else {
    }
    %c0 = arith.constant 0 : index
    %c0_1 = arith.constant 0 : index
    %3 = vector.load %arg2[%c0, %c0_1] : memref<16x128xf32, #tpu.memory_space<vmem>>, vector<16x128xf32>
    %c0_2 = arith.constant 0 : index
    %c0_3 = arith.constant 0 : index
    %4 = vector.load %arg3[%c0_2, %c0_3] : memref<16x128xf32, #tpu.memory_space<vmem>>, vector<16x128xf32>
    %5 = arith.subf %4, %3 : vector<16x128xf32>
    %6 = math.absf %5 : vector<16x128xf32>
    %cst = arith.constant 1.000000e+00 : f32
    %7 = vector.broadcast %cst : f32 to vector<16x128xf32>
    %8 = arith.cmpf ogt, %6, %7 : vector<16x128xf32>
    %cst_4 = arith.constant 5.000000e-01 : f32
    %9 = vector.broadcast %cst_4 : f32 to vector<16x128xf32>
    %10 = arith.subf %6, %9 : vector<16x128xf32>
    %11 = arith.mulf %6, %6 : vector<16x128xf32>
    %cst_5 = arith.constant 5.000000e-01 : f32
    %12 = vector.broadcast %cst_5 : f32 to vector<16x128xf32>
    %13 = arith.mulf %12, %11 : vector<16x128xf32>
    %14 = arith.select %8, %10, %13 : vector<16x128xi1>, vector<16x128xf32>
    %c0_6 = arith.constant 0 : index
    %c0_7 = arith.constant 0 : index
    %15 = vector.load %arg5[%c0_6, %c0_7] : memref<16x128xf32, #tpu.memory_space<vmem>>, vector<16x128xf32>
    %16 = vector.shape_cast %14 : vector<16x128xf32> to vector<1x16x128xf32>
    %cst_8 = arith.constant dense<0.000000e+00> : vector<16x128xf32>
    %17 = vector.multi_reduction <add>, %16, %cst_8 [0] : vector<1x16x128xf32> to vector<16x128xf32>
    %18 = arith.addf %15, %17 : vector<16x128xf32>
    %c0_9 = arith.constant 0 : index
    %c0_10 = arith.constant 0 : index
    %19 = vector.load %arg5[%c0_9, %c0_10] : memref<16x128xf32, #tpu.memory_space<vmem>>, vector<16x128xf32>
    tpu.vector_store %arg5[%c0_9, %c0_10], %18 {strides = array<i32>} : memref<16x128xf32, #tpu.memory_space<vmem>>, vector<16x128xf32>,
    %c0_i32_11 = arith.constant 0 : i32
    %20 = arith.cmpi eq, %arg1, %c0_i32_11 : i32
    %21 = arith.extui %20 : i1 to i32
    %c0_i32_12 = arith.constant 0 : i32
    %22 = arith.cmpi ne, %21, %c0_i32_12 : i32
    scf.if %22 {
      %c0_13 = arith.constant 0 : index
      %c0_14 = arith.constant 0 : index
      %23 = vector.load %arg5[%c0_13, %c0_14] : memref<16x128xf32, #tpu.memory_space<vmem>>, vector<16x128xf32>
      %24 = vector.shape_cast %23 : vector<16x128xf32> to vector<1x16x128xf32>
      %cst_15 = arith.constant dense<0.000000e+00> : vector<1xf32>
      %25 = vector.multi_reduction <add>, %24, %cst_15 [1, 2] : vector<1x16x128xf32> to vector<1xf32>
      %26 = vector.shape_cast %25 : vector<1xf32> to vector<1x1x1xf32>
      %27 = vector.extract %26[0, 0, 0] : f32 from vector<1x1x1xf32>
      %c0_16 = arith.constant 0 : index
      %c0_17 = arith.constant 0 : index
      %28 = memref.load %arg4[%c0_16, %c0_17] : memref<1x1xf32, #tpu.memory_space<smem>>
      memref.store %27, %arg4[%c0_16, %c0_17] : memref<1x1xf32, #tpu.memory_space<smem>>
    } else {
    }
    return
  }
  func.func @transform_0(%arg0: i32, %arg1: i32) -> (i32, i32) {
    %c1_i32 = arith.constant 1 : i32
    %0 = arith.muli %arg0, %c1_i32 : i32
    %1 = arith.addi %0, %arg1 : i32
    %c0_i32 = arith.constant 0 : i32
    %c0_i32_0 = arith.constant 0 : i32
    return %1, %c0_i32 : i32, i32
  }
  func.func @transform_1(%arg0: i32, %arg1: i32) -> (i32, i32) {
    %c1_i32 = arith.constant 1 : i32
    %0 = arith.muli %arg0, %c1_i32 : i32
    %1 = arith.addi %0, %arg1 : i32
    %c0_i32 = arith.constant 0 : i32
    %c0_i32_0 = arith.constant 0 : i32
    return %1, %c0_i32 : i32, i32
  }
  func.func @transform_2(%arg0: i32, %arg1: i32) -> (i32, i32) {
    %c0_i32 = arith.constant 0 : i32
    %c0_i32_0 = arith.constant 0 : i32
    return %arg0, %c0_i32 : i32, i32
  }
}

</mosaic_0001>

<llo_original>
// kernel: tpu_custom_call.1
$region0: #{tpu_custom_call.1}
  #allocation0 [shape = 'u32[]', space=smem, size = 0x4, offset = 0x4, fixed_abs, tag = 'smem constant byte address 0x4 - core index']
  #allocation1 [shape = 'u32[72,128]{1,0:T(1,128)}', space=vmem, size = 0x9000, scoped, tag = 'internal scratch']
  #allocation2 [shape = 'f32[16,128]{1,0:T(8,128)}', space=vmem, size = 0x2000, scoped, tag = 'scratch operand']
  %s0 = inlined_call_operand.hbm [shape: f32[16,128], index: 0, kind: input, shape index: {}]
  %s1 = inlined_call_operand.hbm [shape: f32[16,128], index: 1, kind: input, shape index: {}]
  %s2 = inlined_call_operand.hbm [shape: f32[1,1], index: 2, kind: output, shape index: {}]
  %s3 = sld [smem:[#allocation0]]
  $region34: #{tpu_custom_call.1} parent=0
    _
  %s5 = ssub.s32 1, %s3
  %s6 = scalar_select 0, %s5, %s3
  $region1: #{tpu_custom_call.1} parent=0
    #allocation3 [shape = 'u8[8192]{0}', space=vmem, size = 0x2000, scoped, tag = 'input window, operand 0, single buffered']
    #allocation4 [shape = 's32[1]{0}', space=sflag, size = 0x4, scoped, tag = 'scoped memory for tpu_custom_call.1']
    #allocation5 [shape = 's32[1]{0}', space=sflag, size = 0x4, scoped, tag = 'scoped memory for tpu_custom_call.1']
    #allocation6 [shape = 'u8[8192]{0}', space=vmem, size = 0x2000, scoped, tag = 'input window, operand 1, single buffered']
    #allocation7 [shape = 's32[1]{0}', space=sflag, size = 0x4, scoped, tag = 'scoped memory for tpu_custom_call.1']
    #allocation8 [shape = 'u8[512]{0}', space=smem, size = 0x200, scoped, tag = 'output window, operand 0, single buffered']
    %7 = vsyncpa [#allocation4], 0
    %8 = vsyncpa [#allocation7], 0
    %9 = vsyncpa [#allocation5], 0
    // Predicated region
    $region2: #{tpu_custom_call.1} parent=1 // pred_check
      _
    $region3: #{tpu_custom_call.1} parent=1 // pred_check_branch
      %11 = sbr.rel (0) target = $region5
    $region4: #{tpu_custom_call.1} parent=1 // pred_region
      %s12 = sadd.s32 0, 0
      %s13 = smul.u32 2, %s12
      %15 = vsyncadd [#allocation4], 0
      %s16 = smul.addr %s13, 8
      %s17 = scalar_lea.hbm %s0, %s16
      %s18 = sshll.u32 %s17, 4
      %s19 = int_to_ptr.hbm [resolvable:$true] %s18
      %s20 = sshll.u32 [#allocation3], 4
      %s21 = int_to_ptr.vmem [resolvable:$true] %s20
      %26 = dma.hbm_to_vmem [thread:$0]  %s19, 256, %s21, [#allocation4], 128, 128, 8
    $region5: #{tpu_custom_call.1} parent=1 // pred_fallthru
      _
    // Predicated region
    $region6: #{tpu_custom_call.1} parent=1 // pred_check
      _
    $region7: #{tpu_custom_call.1} parent=1 // pred_check_branch
      %28 = sbr.rel (0) target = $region9
    $region8: #{tpu_custom_call.1} parent=1 // pred_region
      %s29 = sadd.s32 0, 0
      %s30 = smul.u32 2, %s29
      %32 = vsyncadd [#allocation7], 0
      %s33 = smul.addr %s30, 8
      %s34 = scalar_lea.hbm %s1, %s33
      %s35 = sshll.u32 %s34, 4
      %s36 = int_to_ptr.hbm [resolvable:$true] %s35
      %s37 = sshll.u32 [#allocation6], 4
      %s38 = int_to_ptr.vmem [resolvable:$true] %s37
      %43 = dma.hbm_to_vmem [thread:$0]  %s36, 256, %s38, [#allocation7], 128, 128, 8
    $region9: #{tpu_custom_call.1} parent=1 // pred_fallthru
      _
    // Predicated region
    $region10: #{tpu_custom_call.1} parent=1 // pred_check
      _
    $region11: #{tpu_custom_call.1} parent=1 // pred_check_branch
      %45 = sbr.rel (0) target = $region13
    $region12: #{tpu_custom_call.1} parent=1 // pred_region
      %47 = dma.done [#allocation4], 256
    $region13: #{tpu_custom_call.1} parent=1 // pred_fallthru
      _
    // Predicated region
    $region14: #{tpu_custom_call.1} parent=1 // pred_check
      _
    $region15: #{tpu_custom_call.1} parent=1 // pred_check_branch
      %49 = sbr.rel (0) target = $region17
    $region16: #{tpu_custom_call.1} parent=1 // pred_region
      %51 = dma.done [#allocation7], 256
    $region17: #{tpu_custom_call.1} parent=1 // pred_fallthru
      _
    %s52 = sadd.s32 0, 0
    %s53 = smul.u32 2, %s52
    %s54 = sadd.s32 0, 0
    %s55 = smul.u32 2, %s54
    %p56 = scmp.eq.s32.totalorder 0, 0
    // Predicated region
    $region18: #{tpu_custom_call.1} parent=1 // pred_check
      %p57 = pneg %p56
    $region19: #{tpu_custom_call.1} parent=1 // pred_check_branch
      %59 = sbr.rel (%p57) target = $region21
    $region20: #{tpu_custom_call.1} parent=1 // pred_region
      %60 = vst [vmem:[#allocation2] sm:$0xff] 0.0
      %61 = vst [vmem:[#allocation2 + $0x8] sm:$0xff] 0.0
    $region21: #{tpu_custom_call.1} parent=1 // pred_fallthru
      _
    %v62 = vld [vmem:[#allocation3] sm:$0xff]
    %v63 = vld [vmem:[#allocation3 + $0x8] sm:$0xff]
    %v64 = vld [vmem:[#allocation6] sm:$0xff]
    %v65 = vld [vmem:[#allocation6 + $0x8] sm:$0xff]
    %v66 = vsub.f32 %v64, %v62
    %v67 = vsub.f32 %v65, %v63
    %v68 = vand.u32 2147483647, %v66
    %v69 = vand.u32 2147483647, %v67
    %vm70 = vcmp.gt.f32.partialorder %v68, 1.0
    %vm71 = vcmp.gt.f32.partialorder %v69, 1.0
    %v72 = vsub.f32 %v68, 0.5
    %v73 = vsub.f32 %v69, 0.5
    %v74 = vmul.f32 %v68, %v68
    %v75 = vmul.f32 %v69, %v69
    %v76 = vmul.f32 %v74, 0.5
    %v77 = vmul.f32 %v75, 0.5
    %v78 = vsel %vm70, %v72, %v76
    %v79 = vsel %vm71, %v73, %v77
    %v80 = vld [vmem:[#allocation2] sm:$0xff]
    %v81 = vld [vmem:[#allocation2 + $0x8] sm:$0xff]
    %v82 = vadd.f32 %v78, 0.0
    %v83 = vadd.f32 %v79, 0.0
    %v84 = vadd.f32 %v80, %v82
    %v85 = vadd.f32 %v81, %v83
    %86 = vst [vmem:[#allocation2] sm:$0xff] %v84
    %87 = vst [vmem:[#allocation2 + $0x8] sm:$0xff] %v85
    // Predicated region
    $region22: #{tpu_custom_call.1} parent=1 // pred_check
      %p88 = pneg %p56
    $region23: #{tpu_custom_call.1} parent=1 // pred_check_branch
      %90 = sbr.rel (%p88) target = $region25
    $region24: #{tpu_custom_call.1} parent=1 // pred_region
      %v91 = vld [vmem:[#allocation2] sm:$0xff]
      %v92 = vld [vmem:[#allocation2 + $0x8] sm:$0xff]
      %v93 = vadd.f32 %v91, %v92
      %94 = vadd.xlane.f32.xlu0 %v93
      %v95 = vpop.xlane.xlu0 %94
      %v96 = vrot.slane %v95, 4
      %v97 = vadd.f32 %v95, %v96
      %v98 = vrot.slane %v97, 2
      %v99 = vadd.f32 %v97, %v98
      %v100 = vrot.slane %v99, 1
      %v101 = vadd.f32 %v99, %v100
      %s102 = vtos %v101
      %s103 = scalar_lea.smem [#allocation8], 0
      %104 = sst [smem:[%s103]] %s102
    $region25: #{tpu_custom_call.1} parent=1 // pred_fallthru
      _
    // Predicated region
    $region26: #{tpu_custom_call.1} parent=1 // pred_check
      _
    $region27: #{tpu_custom_call.1} parent=1 // pred_check_branch
      %106 = sbr.rel (0) target = $region29
    $region28: #{tpu_custom_call.1} parent=1 // pred_region
      %108 = vsyncadd [#allocation5], 0
      %s110 = sshll.u32 %s2, 4
      %s111 = int_to_ptr.hbm [resolvable:$true] %s110
      %113 = dma.smem_to_hbm [#allocation8], 16, %s111, [#allocation5]
    $region29: #{tpu_custom_call.1} parent=1 // pred_fallthru
      _
    // Predicated region
    $region30: #{tpu_custom_call.1} parent=1 // pred_check
      _
    $region31: #{tpu_custom_call.1} parent=1 // pred_check_branch
      %115 = sbr.rel (0) target = $region33
    $region32: #{tpu_custom_call.1} parent=1 // pred_region
      %117 = dma.done [#allocation5], 16
    $region33: #{tpu_custom_call.1} parent=1 // pred_fallthru
      _
    %118 = sfence
    %119 = vsyncpa [#allocation4], 1
    %120 = vsyncpa [#allocation7], 1
    %121 = vsyncpa [#allocation5], 1

</llo_original>
